<compile_context>
chip_gen: v6e
topology: v6e:2x2x1
jax: 0.10.0
libtpu: 0.0.40
codegen_flags: <defaults>
</compile_context>

<pallas_src>
import jax
import jax.numpy as jnp
from jax.experimental import pallas as pl
from jax.experimental.pallas import tpu as pltpu

HIDDEN_SIZE = 20
NUM_MID_LAYERS = 9   # hidden2 .. hidden10
LANE = 128           # TPU lane width


def combined_nn_kernel(x_ref, w1_ref, b1_ref, wh_ref, bh_ref, wo_ref, bo_ref,
                       o_ref):
    """One batch tile: x_ref (1, TB) -> o_ref (1, TB)."""
    cdt = wh_ref.dtype  # matmul input dtype (f32 or bf16)

    # hidden1: Linear(1, H).  K=1 outer product -> VPU broadcast multiply:
    # (H, 1) * (1, TB) + (H, 1), ReLU, all in f32.
    h = jnp.maximum(w1_ref[...] * x_ref[...] + b1_ref[...], 0.0)

    # hidden2 .. hidden10: (H, H) @ (H, TB) on the MXU, f32 accumulation,
    # bias + ReLU epilogue in f32.  Statically unrolled (9 iterations,
    # static index into the stacked weight tensor -> no dynamic slicing).
    for i in range(NUM_MID_LAYERS):
        z = jnp.dot(wh_ref[i], h.astype(cdt), preferred_element_type=jnp.float32)
        h = jnp.maximum(z + bh_ref[i], 0.0)

    # output: Linear(H, 1) as (1, H) @ (H, TB) -> lane-dense (1, TB) row.
    y = jnp.dot(wo_ref[...], h.astype(cdt), preferred_element_type=jnp.float32)
    o_ref[...] = y + bo_ref[0, 0]          # scalar output bias from SMEM


def _round_up(a, m):
    return ((a + m - 1) // m) * m


def combined_nn_forward(x, params, *, block_b=512, matmul_dtype=jnp.float32):
    """x: (B, 1) float32.  params: dict from init_params.  Returns (B, 1) f32."""
    assert block_b % LANE == 0, "batch tile must be a multiple of 128 lanes"
    B = x.shape[0]
    H = params["w1"].shape[0]

    # Transpose so batch is the lane (minor) axis; pad to a lane-aligned tile.
    tb = min(block_b, _round_up(B, LANE))
    b_pad = _round_up(B, tb)
    xt = x.astype(jnp.float32).reshape(1, B)
    if b_pad != B:
        xt = jnp.pad(xt, ((0, 0), (0, b_pad - B)))

    w1, b1 = params["w1"], params["b1"]           # (H, 1), (H, 1) f32 (VPU layer)
    wh = params["wh"].astype(matmul_dtype)        # (9, H, H)
    bh = params["bh"]                             # (9, H, 1) f32
    wo = params["wo"].astype(matmul_dtype)        # (1, H)
    bo = params["bo"]                             # (1, 1) f32 -> SMEM scalar

    grid = (b_pad // tb,)
    out = pl.pallas_call(
        combined_nn_kernel,
        out_shape=jax.ShapeDtypeStruct((1, b_pad), jnp.float32),
        grid=grid,
        in_specs=[
            pl.BlockSpec((1, tb), lambda i: (0, i)),                    # x tile
            pl.BlockSpec((H, 1), lambda i: (0, 0)),                     # w1
            pl.BlockSpec((H, 1), lambda i: (0, 0)),                     # b1
            pl.BlockSpec((NUM_MID_LAYERS, H, H), lambda i: (0, 0, 0)),  # wh
            pl.BlockSpec((NUM_MID_LAYERS, H, 1), lambda i: (0, 0, 0)),  # bh
            pl.BlockSpec((1, H), lambda i: (0, 0)),                     # wo
            pl.BlockSpec(memory_space=pltpu.MemorySpace.SMEM),          # bo
        ],
        out_specs=pl.BlockSpec((1, tb), lambda i: (0, i)),
        compiler_params=pltpu.CompilerParams(
            dimension_semantics=("parallel",)),
    )(xt, w1, b1, wh, bh, wo, bo)

    return out[:, :B].T                                                  # (B, 1)


def _torch_linear_init(key, fan_in, fan_out):
    """nn.Linear default init, weight kept in PyTorch (out, in) layout."""
    kw, kb = jax.random.split(key)
    bound = 1.0 / (fan_in ** 0.5)
    w = jax.random.uniform(kw, (fan_out, fan_in), jnp.float32, -bound, bound)
    b = jax.random.uniform(kb, (fan_out, 1), jnp.float32, -bound, bound)
    return w, b


def init_params(key, hidden_size=HIDDEN_SIZE):
    keys = jax.random.split(key, 2 + NUM_MID_LAYERS)
    w1, b1 = _torch_linear_init(keys[0], 1, hidden_size)            # hidden1
    whs, bhs = [], []
    for i in range(NUM_MID_LAYERS):                                  # hidden2..10
        w, b = _torch_linear_init(keys[1 + i], hidden_size, hidden_size)
        whs.append(w)
        bhs.append(b)
    wh = jnp.stack(whs, axis=0)                                      # (9, H, H)
    bh = jnp.stack(bhs, axis=0)                                      # (9, H, 1)
    wo, bo = _torch_linear_init(keys[-1], hidden_size, 1)            # output
    return {"w1": w1, "b1": b1, "wh": wh, "bh": bh, "wo": wo, "bo": bo}


def reference_forward(x, params):
    """Pure-JAX reference with PyTorch Linear semantics (y = x @ W.T + b)."""
    h = jnp.maximum(x @ params["w1"].T + params["b1"].T, 0.0)
    for i in range(NUM_MID_LAYERS):
        h = jnp.maximum(h @ params["wh"][i].T + params["bh"][i].T, 0.0)
    return h @ params["wo"].T + params["bo"].T


if __name__ == "__main__":
    key = jax.random.PRNGKey(0)
    k_params, k_x = jax.random.split(key)
    params = init_params(k_params, HIDDEN_SIZE)

    # Small-batch check (single grid step, exact f32 semantics).
    batch = 8
    x = jax.random.normal(k_x, (batch, 1), jnp.float32)
    out = jax.block_until_ready(combined_nn_forward(x, params))
    ref = reference_forward(x, params)
    assert out.shape == (batch, 1), out.shape
    assert jnp.allclose(out, ref, atol=1e-5, rtol=1e-5), (out, ref)

    # Multi-tile check: 3 batch tiles of 128 lanes ('parallel' grid + padding path).
    batch2 = 300
    x2 = jax.random.normal(jax.random.PRNGKey(1), (batch2, 1), jnp.float32)
    out2 = jax.block_until_ready(combined_nn_forward(x2, params, block_b=128))
    ref2 = reference_forward(x2, params)
    assert out2.shape == (batch2, 1), out2.shape
    assert jnp.allclose(out2, ref2, atol=1e-5, rtol=1e-5)

    # bf16 MXU-input path (throughput option for large batches); smoke-check only
    # since exact f32 semantics are verified above.
    out_bf16 = jax.block_until_ready(
        combined_nn_forward(x, params, matmul_dtype=jnp.bfloat16))
    assert out_bf16.shape == (batch, 1)
    assert bool(jnp.all(jnp.isfinite(out_bf16)))

    print("KERNEL_OK")
</pallas_src>

<mosaic_0001>
module attributes {stable_mosaic.version = 11 : i64} {
  func.func @combined_nn_kernel(%arg0: i32, %arg1: memref<1x128xf32, #tpu.memory_space<vmem>>, %arg2: memref<20x1xf32, #tpu.memory_space<vmem>>, %arg3: memref<20x1xf32, #tpu.memory_space<vmem>>, %arg4: memref<9x20x20xf32, #tpu.memory_space<vmem>>, %arg5: memref<9x20x1xf32, #tpu.memory_space<vmem>>, %arg6: memref<1x20xf32, #tpu.memory_space<vmem>>, %arg7: memref<1x1xf32, #tpu.memory_space<smem>>, %arg8: memref<1x128xf32, #tpu.memory_space<vmem>>) attributes {dimension_semantics = [#tpu.dimension_semantics<parallel>], iteration_bounds = array<i64: 1>, scalar_prefetch = 0 : i64, scratch_operands = 0 : i64, tpu.core_type = #tpu.core_type<tc>, window_params = [{transform_indices = @transform_0, window_bounds = array<i64: 1, 128>}, {pipeline_mode = #tpu.pipeline_mode<synchronous>, transform_indices = @transform_1, window_bounds = array<i64: 20, 1>}, {pipeline_mode = #tpu.pipeline_mode<synchronous>, transform_indices = @transform_2, window_bounds = array<i64: 20, 1>}, {pipeline_mode = #tpu.pipeline_mode<synchronous>, transform_indices = @transform_3, window_bounds = array<i64: 9, 20, 20>}, {pipeline_mode = #tpu.pipeline_mode<synchronous>, transform_indices = @transform_4, window_bounds = array<i64: 9, 20, 1>}, {pipeline_mode = #tpu.pipeline_mode<synchronous>, transform_indices = @transform_5, window_bounds = array<i64: 1, 20>}, {transform_indices = @transform_6, window_bounds = array<i64: 1, 1>}, {transform_indices = @transform_7, window_bounds = array<i64: 1, 128>}]} {
    %c0 = arith.constant 0 : index
    %c0_0 = arith.constant 0 : index
    %0 = vector.load %arg2[%c0, %c0_0] : memref<20x1xf32, #tpu.memory_space<vmem>>, vector<20x1xf32>
    %c0_1 = arith.constant 0 : index
    %c0_2 = arith.constant 0 : index
    %1 = vector.load %arg1[%c0_1, %c0_2] : memref<1x128xf32, #tpu.memory_space<vmem>>, vector<1x128xf32>
    %2 = vector.broadcast %0 : vector<20x1xf32> to vector<20x128xf32>
    %3 = vector.broadcast %1 : vector<1x128xf32> to vector<20x128xf32>
    %4 = arith.mulf %2, %3 : vector<20x128xf32>
    %c0_3 = arith.constant 0 : index
    %c0_4 = arith.constant 0 : index
    %5 = vector.load %arg3[%c0_3, %c0_4] : memref<20x1xf32, #tpu.memory_space<vmem>>, vector<20x1xf32>
    %6 = vector.broadcast %5 : vector<20x1xf32> to vector<20x128xf32>
    %7 = arith.addf %4, %6 : vector<20x128xf32>
    %cst = arith.constant 0.000000e+00 : f32
    %8 = vector.broadcast %cst : f32 to vector<20x128xf32>
    %9 = arith.maximumf %7, %8 : vector<20x128xf32>
    %c0_5 = arith.constant 0 : index
    %c0_6 = arith.constant 0 : index
    %c0_7 = arith.constant 0 : index
    %10 = vector.load %arg4[%c0_5, %c0_6, %c0_7] : memref<9x20x20xf32, #tpu.memory_space<vmem>>, vector<1x20x20xf32>
    %11 = vector.shape_cast %10 : vector<1x20x20xf32> to vector<20x20xf32>
    %cst_8 = arith.constant dense<0.000000e+00> : vector<20x128xf32>
    %12 = tpu.matmul %11, %9, %cst_8 {dimension_numbers = #tpu.dot_dimension_numbers<[1], [0], [0], [1], [0, 0, 1, 1], [], []>} : vector<20x20xf32>, vector<20x128xf32>, vector<20x128xf32> -> vector<20x128xf32>
    %c0_9 = arith.constant 0 : index
    %c0_10 = arith.constant 0 : index
    %c0_11 = arith.constant 0 : index
    %13 = vector.load %arg5[%c0_9, %c0_10, %c0_11] : memref<9x20x1xf32, #tpu.memory_space<vmem>>, vector<1x20x1xf32>
    %14 = vector.shape_cast %13 : vector<1x20x1xf32> to vector<20x1xf32>
    %15 = vector.broadcast %14 : vector<20x1xf32> to vector<20x128xf32>
    %16 = arith.addf %12, %15 : vector<20x128xf32>
    %cst_12 = arith.constant 0.000000e+00 : f32
    %17 = vector.broadcast %cst_12 : f32 to vector<20x128xf32>
    %18 = arith.maximumf %16, %17 : vector<20x128xf32>
    %c1 = arith.constant 1 : index
    %c0_13 = arith.constant 0 : index
    %c0_14 = arith.constant 0 : index
    %19 = vector.load %arg4[%c1, %c0_13, %c0_14] : memref<9x20x20xf32, #tpu.memory_space<vmem>>, vector<1x20x20xf32>
    %20 = vector.shape_cast %19 : vector<1x20x20xf32> to vector<20x20xf32>
    %cst_15 = arith.constant dense<0.000000e+00> : vector<20x128xf32>
    %21 = tpu.matmul %20, %18, %cst_15 {dimension_numbers = #tpu.dot_dimension_numbers<[1], [0], [0], [1], [0, 0, 1, 1], [], []>} : vector<20x20xf32>, vector<20x128xf32>, vector<20x128xf32> -> vector<20x128xf32>
    %c1_16 = arith.constant 1 : index
    %c0_17 = arith.constant 0 : index
    %c0_18 = arith.constant 0 : index
    %22 = vector.load %arg5[%c1_16, %c0_17, %c0_18] : memref<9x20x1xf32, #tpu.memory_space<vmem>>, vector<1x20x1xf32>
    %23 = vector.shape_cast %22 : vector<1x20x1xf32> to vector<20x1xf32>
    %24 = vector.broadcast %23 : vector<20x1xf32> to vector<20x128xf32>
    %25 = arith.addf %21, %24 : vector<20x128xf32>
    %cst_19 = arith.constant 0.000000e+00 : f32
    %26 = vector.broadcast %cst_19 : f32 to vector<20x128xf32>
    %27 = arith.maximumf %25, %26 : vector<20x128xf32>
    %c2 = arith.constant 2 : index
    %c0_20 = arith.constant 0 : index
    %c0_21 = arith.constant 0 : index
    %28 = vector.load %arg4[%c2, %c0_20, %c0_21] : memref<9x20x20xf32, #tpu.memory_space<vmem>>, vector<1x20x20xf32>
    %29 = vector.shape_cast %28 : vector<1x20x20xf32> to vector<20x20xf32>
    %cst_22 = arith.constant dense<0.000000e+00> : vector<20x128xf32>
    %30 = tpu.matmul %29, %27, %cst_22 {dimension_numbers = #tpu.dot_dimension_numbers<[1], [0], [0], [1], [0, 0, 1, 1], [], []>} : vector<20x20xf32>, vector<20x128xf32>, vector<20x128xf32> -> vector<20x128xf32>
    %c2_23 = arith.constant 2 : index
    %c0_24 = arith.constant 0 : index
    %c0_25 = arith.constant 0 : index
    %31 = vector.load %arg5[%c2_23, %c0_24, %c0_25] : memref<9x20x1xf32, #tpu.memory_space<vmem>>, vector<1x20x1xf32>
    %32 = vector.shape_cast %31 : vector<1x20x1xf32> to vector<20x1xf32>
    %33 = vector.broadcast %32 : vector<20x1xf32> to vector<20x128xf32>
    %34 = arith.addf %30, %33 : vector<20x128xf32>
    %cst_26 = arith.constant 0.000000e+00 : f32
    %35 = vector.broadcast %cst_26 : f32 to vector<20x128xf32>
    %36 = arith.maximumf %34, %35 : vector<20x128xf32>
    %c3 = arith.constant 3 : index
    %c0_27 = arith.constant 0 : index
    %c0_28 = arith.constant 0 : index
    %37 = vector.load %arg4[%c3, %c0_27, %c0_28] : memref<9x20x20xf32, #tpu.memory_space<vmem>>, vector<1x20x20xf32>
    %38 = vector.shape_cast %37 : vector<1x20x20xf32> to vector<20x20xf32>
    %cst_29 = arith.constant dense<0.000000e+00> : vector<20x128xf32>
    %39 = tpu.matmul %38, %36, %cst_29 {dimension_numbers = #tpu.dot_dimension_numbers<[1], [0], [0], [1], [0, 0, 1, 1], [], []>} : vector<20x20xf32>, vector<20x128xf32>, vector<20x128xf32> -> vector<20x128xf32>
    %c3_30 = arith.constant 3 : index
    %c0_31 = arith.constant 0 : index
    %c0_32 = arith.constant 0 : index
    %40 = vector.load %arg5[%c3_30, %c0_31, %c0_32] : memref<9x20x1xf32, #tpu.memory_space<vmem>>, vector<1x20x1xf32>
    %41 = vector.shape_cast %40 : vector<1x20x1xf32> to vector<20x1xf32>
    %42 = vector.broadcast %41 : vector<20x1xf32> to vector<20x128xf32>
    %43 = arith.addf %39, %42 : vector<20x128xf32>
    %cst_33 = arith.constant 0.000000e+00 : f32
    %44 = vector.broadcast %cst_33 : f32 to vector<20x128xf32>
    %45 = arith.maximumf %43, %44 : vector<20x128xf32>
    %c4 = arith.constant 4 : index
    %c0_34 = arith.constant 0 : index
    %c0_35 = arith.constant 0 : index
    %46 = vector.load %arg4[%c4, %c0_34, %c0_35] : memref<9x20x20xf32, #tpu.memory_space<vmem>>, vector<1x20x20xf32>
    %47 = vector.shape_cast %46 : vector<1x20x20xf32> to vector<20x20xf32>
    %cst_36 = arith.constant dense<0.000000e+00> : vector<20x128xf32>
    %48 = tpu.matmul %47, %45, %cst_36 {dimension_numbers = #tpu.dot_dimension_numbers<[1], [0], [0], [1], [0, 0, 1, 1], [], []>} : vector<20x20xf32>, vector<20x128xf32>, vector<20x128xf32> -> vector<20x128xf32>
    %c4_37 = arith.constant 4 : index
    %c0_38 = arith.constant 0 : index
    %c0_39 = arith.constant 0 : index
    %49 = vector.load %arg5[%c4_37, %c0_38, %c0_39] : memref<9x20x1xf32, #tpu.memory_space<vmem>>, vector<1x20x1xf32>
    %50 = vector.shape_cast %49 : vector<1x20x1xf32> to vector<20x1xf32>
    %51 = vector.broadcast %50 : vector<20x1xf32> to vector<20x128xf32>
    %52 = arith.addf %48, %51 : vector<20x128xf32>
    %cst_40 = arith.constant 0.000000e+00 : f32
    %53 = vector.broadcast %cst_40 : f32 to vector<20x128xf32>
    %54 = arith.maximumf %52, %53 : vector<20x128xf32>
    %c5 = arith.constant 5 : index
    %c0_41 = arith.constant 0 : index
    %c0_42 = arith.constant 0 : index
    %55 = vector.load %arg4[%c5, %c0_41, %c0_42] : memref<9x20x20xf32, #tpu.memory_space<vmem>>, vector<1x20x20xf32>
    %56 = vector.shape_cast %55 : vector<1x20x20xf32> to vector<20x20xf32>
    %cst_43 = arith.constant dense<0.000000e+00> : vector<20x128xf32>
    %57 = tpu.matmul %56, %54, %cst_43 {dimension_numbers = #tpu.dot_dimension_numbers<[1], [0], [0], [1], [0, 0, 1, 1], [], []>} : vector<20x20xf32>, vector<20x128xf32>, vector<20x128xf32> -> vector<20x128xf32>
    %c5_44 = arith.constant 5 : index
    %c0_45 = arith.constant 0 : index
    %c0_46 = arith.constant 0 : index
    %58 = vector.load %arg5[%c5_44, %c0_45, %c0_46] : memref<9x20x1xf32, #tpu.memory_space<vmem>>, vector<1x20x1xf32>
    %59 = vector.shape_cast %58 : vector<1x20x1xf32> to vector<20x1xf32>
    %60 = vector.broadcast %59 : vector<20x1xf32> to vector<20x128xf32>
    %61 = arith.addf %57, %60 : vector<20x128xf32>
    %cst_47 = arith.constant 0.000000e+00 : f32
    %62 = vector.broadcast %cst_47 : f32 to vector<20x128xf32>
    %63 = arith.maximumf %61, %62 : vector<20x128xf32>
    %c6 = arith.constant 6 : index
    %c0_48 = arith.constant 0 : index
    %c0_49 = arith.constant 0 : index
    %64 = vector.load %arg4[%c6, %c0_48, %c0_49] : memref<9x20x20xf32, #tpu.memory_space<vmem>>, vector<1x20x20xf32>
    %65 = vector.shape_cast %64 : vector<1x20x20xf32> to vector<20x20xf32>
    %cst_50 = arith.constant dense<0.000000e+00> : vector<20x128xf32>
    %66 = tpu.matmul %65, %63, %cst_50 {dimension_numbers = #tpu.dot_dimension_numbers<[1], [0], [0], [1], [0, 0, 1, 1], [], []>} : vector<20x20xf32>, vector<20x128xf32>, vector<20x128xf32> -> vector<20x128xf32>
    %c6_51 = arith.constant 6 : index
    %c0_52 = arith.constant 0 : index
    %c0_53 = arith.constant 0 : index
    %67 = vector.load %arg5[%c6_51, %c0_52, %c0_53] : memref<9x20x1xf32, #tpu.memory_space<vmem>>, vector<1x20x1xf32>
    %68 = vector.shape_cast %67 : vector<1x20x1xf32> to vector<20x1xf32>
    %69 = vector.broadcast %68 : vector<20x1xf32> to vector<20x128xf32>
    %70 = arith.addf %66, %69 : vector<20x128xf32>
    %cst_54 = arith.constant 0.000000e+00 : f32
    %71 = vector.broadcast %cst_54 : f32 to vector<20x128xf32>
    %72 = arith.maximumf %70, %71 : vector<20x128xf32>
    %c7 = arith.constant 7 : index
    %c0_55 = arith.constant 0 : index
    %c0_56 = arith.constant 0 : index
    %73 = vector.load %arg4[%c7, %c0_55, %c0_56] : memref<9x20x20xf32, #tpu.memory_space<vmem>>, vector<1x20x20xf32>
    %74 = vector.shape_cast %73 : vector<1x20x20xf32> to vector<20x20xf32>
    %cst_57 = arith.constant dense<0.000000e+00> : vector<20x128xf32>
    %75 = tpu.matmul %74, %72, %cst_57 {dimension_numbers = #tpu.dot_dimension_numbers<[1], [0], [0], [1], [0, 0, 1, 1], [], []>} : vector<20x20xf32>, vector<20x128xf32>, vector<20x128xf32> -> vector<20x128xf32>
    %c7_58 = arith.constant 7 : index
    %c0_59 = arith.constant 0 : index
    %c0_60 = arith.constant 0 : index
    %76 = vector.load %arg5[%c7_58, %c0_59, %c0_60] : memref<9x20x1xf32, #tpu.memory_space<vmem>>, vector<1x20x1xf32>
    %77 = vector.shape_cast %76 : vector<1x20x1xf32> to vector<20x1xf32>
    %78 = vector.broadcast %77 : vector<20x1xf32> to vector<20x128xf32>
    %79 = arith.addf %75, %78 : vector<20x128xf32>
    %cst_61 = arith.constant 0.000000e+00 : f32
    %80 = vector.broadcast %cst_61 : f32 to vector<20x128xf32>
    %81 = arith.maximumf %79, %80 : vector<20x128xf32>
    %c8 = arith.constant 8 : index
    %c0_62 = arith.constant 0 : index
    %c0_63 = arith.constant 0 : index
    %82 = vector.load %arg4[%c8, %c0_62, %c0_63] : memref<9x20x20xf32, #tpu.memory_space<vmem>>, vector<1x20x20xf32>
    %83 = vector.shape_cast %82 : vector<1x20x20xf32> to vector<20x20xf32>
    %cst_64 = arith.constant dense<0.000000e+00> : vector<20x128xf32>
    %84 = tpu.matmul %83, %81, %cst_64 {dimension_numbers = #tpu.dot_dimension_numbers<[1], [0], [0], [1], [0, 0, 1, 1], [], []>} : vector<20x20xf32>, vector<20x128xf32>, vector<20x128xf32> -> vector<20x128xf32>
    %c8_65 = arith.constant 8 : index
    %c0_66 = arith.constant 0 : index
    %c0_67 = arith.constant 0 : index
    %85 = vector.load %arg5[%c8_65, %c0_66, %c0_67] : memref<9x20x1xf32, #tpu.memory_space<vmem>>, vector<1x20x1xf32>
    %86 = vector.shape_cast %85 : vector<1x20x1xf32> to vector<20x1xf32>
    %87 = vector.broadcast %86 : vector<20x1xf32> to vector<20x128xf32>
    %88 = arith.addf %84, %87 : vector<20x128xf32>
    %cst_68 = arith.constant 0.000000e+00 : f32
    %89 = vector.broadcast %cst_68 : f32 to vector<20x128xf32>
    %90 = arith.maximumf %88, %89 : vector<20x128xf32>
    %c0_69 = arith.constant 0 : index
    %c0_70 = arith.constant 0 : index
    %91 = vector.load %arg6[%c0_69, %c0_70] : memref<1x20xf32, #tpu.memory_space<vmem>>, vector<1x20xf32>
    %cst_71 = arith.constant dense<0.000000e+00> : vector<1x128xf32>
    %92 = tpu.matmul %91, %90, %cst_71 {dimension_numbers = #tpu.dot_dimension_numbers<[1], [0], [0], [1], [0, 0, 1, 1], [], []>} : vector<1x20xf32>, vector<20x128xf32>, vector<1x128xf32> -> vector<1x128xf32>
    %c0_72 = arith.constant 0 : index
    %c0_73 = arith.constant 0 : index
    %93 = memref.load %arg7[%c0_72, %c0_73] : memref<1x1xf32, #tpu.memory_space<smem>>
    %94 = vector.broadcast %93 : f32 to vector<1x128xf32>
    %95 = arith.addf %92, %94 : vector<1x128xf32>
    %c0_74 = arith.constant 0 : index
    %c0_75 = arith.constant 0 : index
    %96 = vector.load %arg8[%c0_74, %c0_75] : memref<1x128xf32, #tpu.memory_space<vmem>>, vector<1x128xf32>
    tpu.vector_store %arg8[%c0_74, %c0_75], %95 {strides = array<i32>} : memref<1x128xf32, #tpu.memory_space<vmem>>, vector<1x128xf32>,
    return
  }
  func.func @transform_0(%arg0: i32) -> (i32, i32) {
    %c0_i32 = arith.constant 0 : i32
    %c0_i32_0 = arith.constant 0 : i32
    return %c0_i32, %arg0 : i32, i32
  }
  func.func @transform_1(%arg0: i32) -> (i32, i32) {
    %c0_i32 = arith.constant 0 : i32
    %c0_i32_0 = arith.constant 0 : i32
    %c0_i32_1 = arith.constant 0 : i32
    return %c0_i32, %c0_i32_0 : i32, i32
  }
  func.func @transform_2(%arg0: i32) -> (i32, i32) {
    %c0_i32 = arith.constant 0 : i32
    %c0_i32_0 = arith.constant 0 : i32
    %c0_i32_1 = arith.constant 0 : i32
    return %c0_i32, %c0_i32_0 : i32, i32
  }
  func.func @transform_3(%arg0: i32) -> (i32, i32, i32) {
    %c0_i32 = arith.constant 0 : i32
    %c0_i32_0 = arith.constant 0 : i32
    %c0_i32_1 = arith.constant 0 : i32
    %c0_i32_2 = arith.constant 0 : i32
    return %c0_i32, %c0_i32_0, %c0_i32_1 : i32, i32, i32
  }
  func.func @transform_4(%arg0: i32) -> (i32, i32, i32) {
    %c0_i32 = arith.constant 0 : i32
    %c0_i32_0 = arith.constant 0 : i32
    %c0_i32_1 = arith.constant 0 : i32
    %c0_i32_2 = arith.constant 0 : i32
    return %c0_i32, %c0_i32_0, %c0_i32_1 : i32, i32, i32
  }
  func.func @transform_5(%arg0: i32) -> (i32, i32) {
    %c0_i32 = arith.constant 0 : i32
    %c0_i32_0 = arith.constant 0 : i32
    %c0_i32_1 = arith.constant 0 : i32
    return %c0_i32, %c0_i32_0 : i32, i32
  }
  func.func @transform_6(%arg0: i32) -> (i32, i32) {
    %c0_i32 = arith.constant 0 : i32
    %c0_i32_0 = arith.constant 0 : i32
    %c0_i32_1 = arith.constant 0 : i32
    return %c0_i32, %c0_i32_0 : i32, i32
  }
  func.func @transform_7(%arg0: i32) -> (i32, i32) {
    %c0_i32 = arith.constant 0 : i32
    %c0_i32_0 = arith.constant 0 : i32
    return %c0_i32, %arg0 : i32, i32
  }
}

</mosaic_0001>

<llo_original>
// kernel: tpu_custom_call.1
$region0: #{tpu_custom_call.1}
  #allocation0 [shape = 'u32[]', space=smem, size = 0x4, offset = 0x4, fixed_abs, tag = 'smem constant byte address 0x4 - core index']
  #allocation1 [shape = 'u32[144,128]{1,0:T(1,128)}', space=vmem, size = 0x12000, scoped, tag = 'internal scratch']
  #allocation2 [shape = 'f32[1,1]{1,0:T(1,128)S(6)}', space=smem, size = 0x200, scoped, tag = 'scoped memory for tpu_custom_call.1']
  %s0 = inlined_call_operand.vmem [shape: f32[1,128], index: 0, kind: input, shape index: {}]
  %s1 = inlined_call_operand.vmem [shape: f32[20,1], index: 1, kind: input, shape index: {}]
  %s2 = inlined_call_operand.vmem [shape: f32[20,1], index: 2, kind: input, shape index: {}]
  %s3 = inlined_call_operand.vmem [shape: f32[9,20,20], index: 3, kind: input, shape index: {}]
  %s4 = inlined_call_operand.vmem [shape: f32[9,20,1], index: 4, kind: input, shape index: {}]
  %s5 = inlined_call_operand.vmem [shape: f32[1,20], index: 5, kind: input, shape index: {}]
  %s6 = inlined_call_operand.<no memory space> [shape: f32[1,1], index: 6, kind: input, shape index: {}]
  %s7 = inlined_call_operand.hbm [shape: f32[1,128], index: 7, kind: output, shape index: {}]
  %s8 = sld [smem:[#allocation0]]
  $region38: #{tpu_custom_call.1} parent=0
    _
  %s10 = ssub.s32 1, %s8
  %s11 = scalar_select 0, %s10, %s8
  %12 = sst [smem:[#allocation2]] %s6
  $region1: #{tpu_custom_call.1} parent=0
    #allocation3 [shape = 'u8[512]{0}', space=vmem, size = 0x400, scoped, tag = 'output window, operand 0, single buffered']
    #allocation4 [shape = 's32[1]{0}', space=sflag, size = 0x4, scoped, tag = 'scoped memory for tpu_custom_call.1']
    %13 = vsyncpa [#allocation4], 0
    // Predicated region
    $region2: #{tpu_custom_call.1} parent=1 // pred_check
      _
    $region3: #{tpu_custom_call.1} parent=1 // pred_check_branch
      %15 = sbr.rel (0) target = $region5
    $region4: #{tpu_custom_call.1} parent=1 // pred_region
      _
    $region5: #{tpu_custom_call.1} parent=1 // pred_fallthru
      _
    // Predicated region
    $region6: #{tpu_custom_call.1} parent=1 // pred_check
      _
    $region7: #{tpu_custom_call.1} parent=1 // pred_check_branch
      %17 = sbr.rel (0) target = $region9
    $region8: #{tpu_custom_call.1} parent=1 // pred_region
      _
    $region9: #{tpu_custom_call.1} parent=1 // pred_fallthru
      _
    // Predicated region
    $region10: #{tpu_custom_call.1} parent=1 // pred_check
      _
    $region11: #{tpu_custom_call.1} parent=1 // pred_check_branch
      %19 = sbr.rel (0) target = $region13
    $region12: #{tpu_custom_call.1} parent=1 // pred_region
      _
    $region13: #{tpu_custom_call.1} parent=1 // pred_fallthru
      _
    // Predicated region
    $region14: #{tpu_custom_call.1} parent=1 // pred_check
      _
    $region15: #{tpu_custom_call.1} parent=1 // pred_check_branch
      %21 = sbr.rel (0) target = $region17
    $region16: #{tpu_custom_call.1} parent=1 // pred_region
      _
    $region17: #{tpu_custom_call.1} parent=1 // pred_fallthru
      _
    // Predicated region
    $region18: #{tpu_custom_call.1} parent=1 // pred_check
      _
    $region19: #{tpu_custom_call.1} parent=1 // pred_check_branch
      %23 = sbr.rel (0) target = $region21
    $region20: #{tpu_custom_call.1} parent=1 // pred_region
      _
    $region21: #{tpu_custom_call.1} parent=1 // pred_fallthru
      _
    // Predicated region
    $region22: #{tpu_custom_call.1} parent=1 // pred_check
      _
    $region23: #{tpu_custom_call.1} parent=1 // pred_check_branch
      %25 = sbr.rel (0) target = $region25
    $region24: #{tpu_custom_call.1} parent=1 // pred_region
      _
    $region25: #{tpu_custom_call.1} parent=1 // pred_fallthru
      _
    // Predicated region
    $region26: #{tpu_custom_call.1} parent=1 // pred_check
      _
    $region27: #{tpu_custom_call.1} parent=1 // pred_check_branch
      %27 = sbr.rel (0) target = $region29
    $region28: #{tpu_custom_call.1} parent=1 // pred_region
      _
    $region29: #{tpu_custom_call.1} parent=1 // pred_fallthru
      _
    %v28 = vld [vmem:[%s1] sm:$0xff]
    %v29 = vld [vmem:[%s1 + $0x8] sm:$0xff]
    %v30 = vld [vmem:[%s1 + $0x10] sm:$0xf]
    %v31 = vld [vmem:[%s0] sm:$0x1]
    %33 = vset.pattern.permute.xlu0 0
    %34 = vperm.xlu0 %33, %v28
    %v35 = vpop.permute.xlu0 %34
    %38 = vset.pattern.permute.xlu0 0
    %39 = vperm.xlu0 %38, %v29
    %v40 = vpop.permute.xlu0 %39
    %43 = vset.pattern.permute.xlu0 0
    %44 = vperm.xlu0 %43, %v30
    %v45 = vpop.permute.xlu0 %44
    %v48 = vlaneseq
    %v49 = vshrl.u32 %v48, 7
    %v50 = vsub.s32 0, %v49
    %v51 = vrot.slane %v31, %v50
    %v53 = vmul.f32 %v35, %v51
    %v54 = vmul.f32 %v40, %v51
    %v55 = vmul.f32 %v45, %v51
    %v56 = vld [vmem:[%s2] sm:$0xff]
    %v57 = vld [vmem:[%s2 + $0x8] sm:$0xff]
    %v58 = vld [vmem:[%s2 + $0x10] sm:$0xf]
    %60 = vset.pattern.permute.xlu0 0
    %61 = vperm.xlu0 %60, %v56
    %v62 = vpop.permute.xlu0 %61
    %65 = vset.pattern.permute.xlu0 0
    %66 = vperm.xlu0 %65, %v57
    %v67 = vpop.permute.xlu0 %66
    %70 = vset.pattern.permute.xlu0 0
    %71 = vperm.xlu0 %70, %v58
    %v72 = vpop.permute.xlu0 %71
    %v74 = vadd.f32 %v53, %v62
    %v75 = vadd.f32 %v54, %v67
    %v76 = vadd.f32 %v55, %v72
    %v77 = vmax.f32 %v74, 0.0
    %v78 = vmax.f32 %v75, 0.0
    %v79 = vmax.f32 %v76, 0.0
    %v80 = vld [vmem:[%s3] sm:$0xff]
    %v81 = vld [vmem:[%s3 + $0x8] sm:$0xff]
    %v82 = vld [vmem:[%s3 + $0x10] sm:$0xf]
    %v83 = vld [vmem:[%s4] sm:$0xff]
    %v84 = vld [vmem:[%s4 + $0x8] sm:$0xff]
    %v85 = vld [vmem:[%s4 + $0x10] sm:$0xf]
    %87 = vset.pattern.permute.xlu0 0
    %88 = vperm.xlu0 %87, %v83
    %v89 = vpop.permute.xlu0 %88
    %92 = vset.pattern.permute.xlu0 0
    %93 = vperm.xlu0 %92, %v84
    %v94 = vpop.permute.xlu0 %93
    %97 = vset.pattern.permute.xlu0 0
    %98 = vperm.xlu0 %97, %v85
    %v99 = vpop.permute.xlu0 %98
    %vm101 = vcmask 162816
    %v103 = vsel %vm101, %v80, 0
    %v106 = vsel %vm101, %v81, 0
    %v109 = vsel %vm101, %v82, 0
    %vm111 = vcmask 1043456
    %v113 = vsel %vm111, %v79, 0
    %115 = vmatprep.subr.mxu0 0.0
    %116 = vmatpush1.msra.mxu0 0.0
    %117 = vmatprep.subr.mxu0 0.0
    %118 = vmatpush1.msra.mxu0 0.0
    %119 = vmatprep.subr.mxu0 0.0
    %120 = vmatpush1.msra.mxu0 0.0
    %121 = vmatprep.subr.mxu0 0.0
    %122 = vmatpush1.msra.mxu0 0.0
    %123 = vmatprep.subr.mxu0 0.0
    %124 = vmatpush1.msra.mxu0 0.0
    %125 = vmatprep.subr.mxu0 0.0
    %126 = vmatpush1.msra.mxu0 0.0
    %127 = vmatprep.subr.mxu0 0.0
    %128 = vmatpush1.msra.mxu0 0.0
    %129 = vmatprep.subr.mxu0 0.0
    %130 = vmatpush1.msra.mxu0 0.0
    %131 = vmatprep.subr.mxu0 0.0
    %132 = vmatpush1.msra.mxu0 0.0
    %133 = vmatprep.subr.mxu0 0.0
    %134 = vmatpush1.msra.mxu0 0.0
    %135 = vmatprep.subr.mxu0 0.0
    %136 = vmatpush1.msra.mxu0 0.0
    %137 = vmatprep.subr.mxu0 0.0
    %138 = vmatpush1.msra.mxu0 0.0
    %139 = vmatprep.subr.mxu0 0.0
    %140 = vmatpush1.msra.mxu0 0.0
    %141 = vmatprep.subr.mxu0 0.0
    %142 = vmatpush1.msra.mxu0 %v113
    %143 = vmatprep.subr.mxu0 0.0
    %144 = vmatpush1.msra.mxu0 %v78
    %145 = vmatprep.subr.mxu0 0.0
    %146 = vmatpush1.msra.mxu0 %v77
    %147 = vmatprep.subr.mxu0 0.0
    %148 = vmatpush2.msra.mxu0 0.0
    %149 = vmatprep.subr.mxu0 0.0
    %150 = vmatpush2.msra.mxu0 0.0
    %151 = vmatprep.subr.mxu0 0.0
    %152 = vmatpush2.msra.mxu0 0.0
    %153 = vmatprep.subr.mxu0 0.0
    %154 = vmatpush2.msra.mxu0 0.0
    %155 = vmatprep.subr.mxu0 0.0
    %156 = vmatpush2.msra.mxu0 0.0
    %157 = vmatprep.subr.mxu0 0.0
    %158 = vmatpush2.msra.mxu0 0.0
    %159 = vmatprep.subr.mxu0 0.0
    %160 = vmatpush2.msra.mxu0 0.0
    %161 = vmatprep.subr.mxu0 0.0
    %162 = vmatpush2.msra.mxu0 0.0
    %163 = vmatprep.subr.mxu0 0.0
    %164 = vmatpush2.msra.mxu0 0.0
    %165 = vmatprep.subr.mxu0 0.0
    %166 = vmatpush2.msra.mxu0 0.0
    %167 = vmatprep.subr.mxu0 0.0
    %168 = vmatpush2.msra.mxu0 0.0
    %169 = vmatprep.subr.mxu0 0.0
    %170 = vmatpush2.msra.mxu0 0.0
    %171 = vmatprep.subr.mxu0 0.0
    %172 = vmatpush2.msra.mxu0 0.0
    %173 = vmatprep.subr.mxu0 0.0
    %174 = vmatpush2.msra.mxu0 0.0
    %175 = vmatprep.subr.mxu0 0.0
    %176 = vmatpush2.msra.mxu0 0.0
    %177 = vmatprep.subr.mxu0 0.0
    %178 = vmatpush2.msra.mxu0 0.0
    %179 = vmatprep.mubr.f32.mxu0 0.0
    %180 = vmatmul.mubr.f32.gmra.mxu0 %v103
    %v181 = vpop.f32.mrf.mxu0
    %v182 = vadd.f32 %v89, %v181
    %v183 = vpop.f32.mrf.mxu0
    %184 = vmatprep.mubr.f32.mxu0 0.0
    %185 = vmatmul.mubr.f32.gmra.mxu0 %v106
    %v186 = vpop.f32.mrf.mxu0
    %v187 = vadd.f32 %v94, %v186
    %v188 = vpop.f32.mrf.mxu0
    %189 = vmatprep.mubr.f32.mxu0 0.0
    %190 = vmatmul.mubr.f32.gmra.mxu0 %v109
    %v191 = vpop.f32.mrf.mxu0
    %v192 = vadd.f32 %v99, %v191
    %v193 = vpop.f32.mrf.mxu0
    %194 = vdwg.mxu0
    %v195 = vmax.f32 %v182, 0.0
    %v196 = vmax.f32 %v187, 0.0
    %v197 = vmax.f32 %v192, 0.0
    %s198 = scalar_lea.vmem %s3, 24
    %v199 = vld [vmem:[%s198] sm:$0xff]
    %v200 = vld [vmem:[%s198 + $0x8] sm:$0xff]
    %v201 = vld [vmem:[%s198 + $0x10] sm:$0xf]
    %s202 = scalar_lea.vmem %s4, 24
    %v203 = vld [vmem:[%s202] sm:$0xff]
    %v204 = vld [vmem:[%s202 + $0x8] sm:$0xff]
    %v205 = vld [vmem:[%s202 + $0x10] sm:$0xf]
    %207 = vset.pattern.permute.xlu0 0
    %208 = vperm.xlu0 %207, %v203
    %v209 = vpop.permute.xlu0 %208
    %212 = vset.pattern.permute.xlu0 0
    %213 = vperm.xlu0 %212, %v204
    %v214 = vpop.permute.xlu0 %213
    %217 = vset.pattern.permute.xlu0 0
    %218 = vperm.xlu0 %217, %v205
    %v219 = vpop.permute.xlu0 %218
    %v222 = vsel %vm101, %v199, 0
    %v225 = vsel %vm101, %v200, 0
    %v228 = vsel %vm101, %v201, 0
    %v231 = vsel %vm111, %v197, 0
    %233 = vmatprep.subr.mxu0 0.0
    %234 = vmatpush1.msra.mxu0 0.0
    %235 = vmatprep.subr.mxu0 0.0
    %236 = vmatpush1.msra.mxu0 0.0
    %237 = vmatprep.subr.mxu0 0.0
    %238 = vmatpush1.msra.mxu0 0.0
    %239 = vmatprep.subr.mxu0 0.0
    %240 = vmatpush1.msra.mxu0 0.0
    %241 = vmatprep.subr.mxu0 0.0
    %242 = vmatpush1.msra.mxu0 0.0
    %243 = vmatprep.subr.mxu0 0.0
    %244 = vmatpush1.msra.mxu0 0.0
    %245 = vmatprep.subr.mxu0 0.0
    %246 = vmatpush1.msra.mxu0 0.0
    %247 = vmatprep.subr.mxu0 0.0
    %248 = vmatpush1.msra.mxu0 0.0
    %249 = vmatprep.subr.mxu0 0.0
    %250 = vmatpush1.msra.mxu0 0.0
    %251 = vmatprep.subr.mxu0 0.0
    %252 = vmatpush1.msra.mxu0 0.0
    %253 = vmatprep.subr.mxu0 0.0
    %254 = vmatpush1.msra.mxu0 0.0
    %255 = vmatprep.subr.mxu0 0.0
    %256 = vmatpush1.msra.mxu0 0.0
    %257 = vmatprep.subr.mxu0 0.0
    %258 = vmatpush1.msra.mxu0 0.0
    %259 = vmatprep.subr.mxu0 0.0
    %260 = vmatpush1.msra.mxu0 %v231
    %261 = vmatprep.subr.mxu0 0.0
    %262 = vmatpush1.msra.mxu0 %v196
    %263 = vmatprep.subr.mxu0 0.0
    %264 = vmatpush1.msra.mxu0 %v195
    %265 = vmatprep.subr.mxu0 0.0
    %266 = vmatpush2.msra.mxu0 0.0
    %267 = vmatprep.subr.mxu0 0.0
    %268 = vmatpush2.msra.mxu0 0.0
    %269 = vmatprep.subr.mxu0 0.0
    %270 = vmatpush2.msra.mxu0 0.0
    %271 = vmatprep.subr.mxu0 0.0
    %272 = vmatpush2.msra.mxu0 0.0
    %273 = vmatprep.subr.mxu0 0.0
    %274 = vmatpush2.msra.mxu0 0.0
    %275 = vmatprep.subr.mxu0 0.0
    %276 = vmatpush2.msra.mxu0 0.0
    %277 = vmatprep.subr.mxu0 0.0
    %278 = vmatpush2.msra.mxu0 0.0
    %279 = vmatprep.subr.mxu0 0.0
    %280 = vmatpush2.msra.mxu0 0.0
    %281 = vmatprep.subr.mxu0 0.0
    %282 = vmatpush2.msra.mxu0 0.0
    %283 = vmatprep.subr.mxu0 0.0
    %284 = vmatpush2.msra.mxu0 0.0
    %285 = vmatprep.subr.mxu0 0.0
    %286 = vmatpush2.msra.mxu0 0.0
    %287 = vmatprep.subr.mxu0 0.0
    %288 = vmatpush2.msra.mxu0 0.0
    %289 = vmatprep.subr.mxu0 0.0
    %290 = vmatpush2.msra.mxu0 0.0
    %291 = vmatprep.subr.mxu0 0.0
    %292 = vmatpush2.msra.mxu0 0.0
    %293 = vmatprep.subr.mxu0 0.0
    %294 = vmatpush2.msra.mxu0 0.0
    %295 = vmatprep.subr.mxu0 0.0
    %296 = vmatpush2.msra.mxu0 0.0
    %297 = vmatprep.mubr.f32.mxu0 0.0
    %298 = vmatmul.mubr.f32.gmra.mxu0 %v222
    %v299 = vpop.f32.mrf.mxu0
    %v300 = vadd.f32 %v209, %v299
    %v301 = vpop.f32.mrf.mxu0
    %302 = vmatprep.mubr.f32.mxu0 0.0
    %303 = vmatmul.mubr.f32.gmra.mxu0 %v225
    %v304 = vpop.f32.mrf.mxu0
    %v305 = vadd.f32 %v214, %v304
    %v306 = vpop.f32.mrf.mxu0
    %307 = vmatprep.mubr.f32.mxu0 0.0
    %308 = vmatmul.mubr.f32.gmra.mxu0 %v228
    %v309 = vpop.f32.mrf.mxu0
    %v310 = vadd.f32 %v219, %v309
    %v311 = vpop.f32.mrf.mxu0
    %312 = vdwg.mxu0
    %v313 = vmax.f32 %v300, 0.0
    %v314 = vmax.f32 %v305, 0.0
    %v315 = vmax.f32 %v310, 0.0
    %s316 = scalar_lea.vmem %s3, 48
    %v317 = vld [vmem:[%s316] sm:$0xff]
    %v318 = vld [vmem:[%s316 + $0x8] sm:$0xff]
    %v319 = vld [vmem:[%s316 + $0x10] sm:$0xf]
    %s320 = scalar_lea.vmem %s4, 48
    %v321 = vld [vmem:[%s320] sm:$0xff]
    %v322 = vld [vmem:[%s320 + $0x8] sm:$0xff]
    %v323 = vld [vmem:[%s320 + $0x10] sm:$0xf]
    %325 = vset.pattern.permute.xlu0 0
    %326 = vperm.xlu0 %325, %v321
    %v327 = vpop.permute.xlu0 %326
    %330 = vset.pattern.permute.xlu0 0
    %331 = vperm.xlu0 %330, %v322
    %v332 = vpop.permute.xlu0 %331
    %335 = vset.pattern.permute.xlu0 0
    %336 = vperm.xlu0 %335, %v323
    %v337 = vpop.permute.xlu0 %336
    %v340 = vsel %vm101, %v317, 0
    %v343 = vsel %vm101, %v318, 0
    %v346 = vsel %vm101, %v319, 0
    %v349 = vsel %vm111, %v315, 0
    %351 = vmatprep.subr.mxu0 0.0
    %352 = vmatpush1.msra.mxu0 0.0
    %353 = vmatprep.subr.mxu0 0.0
    %354 = vmatpush1.msra.mxu0 0.0
    %355 = vmatprep.subr.mxu0 0.0
    %356 = vmatpush1.msra.mxu0 0.0
    %357 = vmatprep.subr.mxu0 0.0
    %358 = vmatpush1.msra.mxu0 0.0
    %359 = vmatprep.subr.mxu0 0.0
    %360 = vmatpush1.msra.mxu0 0.0
    %361 = vmatprep.subr.mxu0 0.0
    %362 = vmatpush1.msra.mxu0 0.0
    %363 = vmatprep.subr.mxu0 0.0
    %364 = vmatpush1.msra.mxu0 0.0
    %365 = vmatprep.subr.mxu0 0.0
    %366 = vmatpush1.msra.mxu0 0.0
    %367 = vmatprep.subr.mxu0 0.0
    %368 = vmatpush1.msra.mxu0 0.0
    %369 = vmatprep.subr.mxu0 0.0
    %370 = vmatpush1.msra.mxu0 0.0
    %371 = vmatprep.subr.mxu0 0.0
    %372 = vmatpush1.msra.mxu0 0.0
    %373 = vmatprep.subr.mxu0 0.0
    %374 = vmatpush1.msra.mxu0 0.0
    %375 = vmatprep.subr.mxu0 0.0
    %376 = vmatpush1.msra.mxu0 0.0
    %377 = vmatprep.subr.mxu0 0.0
    %378 = vmatpush1.msra.mxu0 %v349
    %379 = vmatprep.subr.mxu0 0.0
    %380 = vmatpush1.msra.mxu0 %v314
    %381 = vmatprep.subr.mxu0 0.0
    %382 = vmatpush1.msra.mxu0 %v313
    %383 = vmatprep.subr.mxu0 0.0
    %384 = vmatpush2.msra.mxu0 0.0
    %385 = vmatprep.subr.mxu0 0.0
    %386 = vmatpush2.msra.mxu0 0.0
    %387 = vmatprep.subr.mxu0 0.0
    %388 = vmatpush2.msra.mxu0 0.0
    %389 = vmatprep.subr.mxu0 0.0
    %390 = vmatpush2.msra.mxu0 0.0
    %391 = vmatprep.subr.mxu0 0.0
    %392 = vmatpush2.msra.mxu0 0.0
    %393 = vmatprep.subr.mxu0 0.0
    %394 = vmatpush2.msra.mxu0 0.0
    %395 = vmatprep.subr.mxu0 0.0
    %396 = vmatpush2.msra.mxu0 0.0
    %397 = vmatprep.subr.mxu0 0.0
    %398 = vmatpush2.msra.mxu0 0.0
    %399 = vmatprep.subr.mxu0 0.0
    %400 = vmatpush2.msra.mxu0 0.0
    %401 = vmatprep.subr.mxu0 0.0
    %402 = vmatpush2.msra.mxu0 0.0
    %403 = vmatprep.subr.mxu0 0.0
    %404 = vmatpush2.msra.mxu0 0.0
    %405 = vmatprep.subr.mxu0 0.0
    %406 = vmatpush2.msra.mxu0 0.0
    %407 = vmatprep.subr.mxu0 0.0
    %408 = vmatpush2.msra.mxu0 0.0
    %409 = vmatprep.subr.mxu0 0.0
    %410 = vmatpush2.msra.mxu0 0.0
    %411 = vmatprep.subr.mxu0 0.0
    %412 = vmatpush2.msra.mxu0 0.0
    %413 = vmatprep.subr.mxu0 0.0
    %414 = vmatpush2.msra.mxu0 0.0
    %415 = vmatprep.mubr.f32.mxu0 0.0
    %416 = vmatmul.mubr.f32.gmra.mxu0 %v340
    %v417 = vpop.f32.mrf.mxu0
    %v418 = vadd.f32 %v327, %v417
    %v419 = vpop.f32.mrf.mxu0
    %420 = vmatprep.mubr.f32.mxu0 0.0
    %421 = vmatmul.mubr.f32.gmra.mxu0 %v343
    %v422 = vpop.f32.mrf.mxu0
    %v423 = vadd.f32 %v332, %v422
    %v424 = vpop.f32.mrf.mxu0
    %425 = vmatprep.mubr.f32.mxu0 0.0
    %426 = vmatmul.mubr.f32.gmra.mxu0 %v346
    %v427 = vpop.f32.mrf.mxu0
    %v428 = vadd.f32 %v337, %v427
    %v429 = vpop.f32.mrf.mxu0
    %430 = vdwg.mxu0
    %v431 = vmax.f32 %v418, 0.0
    %v432 = vmax.f32 %v423, 0.0
    %v433 = vmax.f32 %v428, 0.0
    %s434 = scalar_lea.vmem %s3, 72
    %v435 = vld [vmem:[%s434] sm:$0xff]
    %v436 = vld [vmem:[%s434 + $0x8] sm:$0xff]
    %v437 = vld [vmem:[%s434 + $0x10] sm:$0xf]
    %s438 = scalar_lea.vmem %s4, 72
    %v439 = vld [vmem:[%s438] sm:$0xff]
    %v440 = vld [vmem:[%s438 + $0x8] sm:$0xff]
    %v441 = vld [vmem:[%s438 + $0x10] sm:$0xf]
    %443 = vset.pattern.permute.xlu0 0
    %444 = vperm.xlu0 %443, %v439
    %v445 = vpop.permute.xlu0 %444
    %448 = vset.pattern.permute.xlu0 0
    %449 = vperm.xlu0 %448, %v440
    %v450 = vpop.permute.xlu0 %449
    %453 = vset.pattern.permute.xlu0 0
    %454 = vperm.xlu0 %453, %v441
    %v455 = vpop.permute.xlu0 %454
    %v458 = vsel %vm101, %v435, 0
    %v461 = vsel %vm101, %v436, 0
    %v464 = vsel %vm101, %v437, 0
    %v467 = vsel %vm111, %v433, 0
    %469 = vmatprep.subr.mxu0 0.0
    %470 = vmatpush1.msra.mxu0 0.0
    %471 = vmatprep.subr.mxu0 0.0
    %472 = vmatpush1.msra.mxu0 0.0
    %473 = vmatprep.subr.mxu0 0.0
    %474 = vmatpush1.msra.mxu0 0.0
    %475 = vmatprep.subr.mxu0 0.0
    %476 = vmatpush1.msra.mxu0 0.0
    %477 = vmatprep.subr.mxu0 0.0
    %478 = vmatpush1.msra.mxu0 0.0
    %479 = vmatprep.subr.mxu0 0.0
    %480 = vmatpush1.msra.mxu0 0.0
    %481 = vmatprep.subr.mxu0 0.0
    %482 = vmatpush1.msra.mxu0 0.0
    %483 = vmatprep.subr.mxu0 0.0
    %484 = vmatpush1.msra.mxu0 0.0
    %485 = vmatprep.subr.mxu0 0.0
    %486 = vmatpush1.msra.mxu0 0.0
    %487 = vmatprep.subr.mxu0 0.0
    %488 = vmatpush1.msra.mxu0 0.0
    %489 = vmatprep.subr.mxu0 0.0
    %490 = vmatpush1.msra.mxu0 0.0
    %491 = vmatprep.subr.mxu0 0.0
    %492 = vmatpush1.msra.mxu0 0.0
    %493 = vmatprep.subr.mxu0 0.0
    %494 = vmatpush1.msra.mxu0 0.0
    %495 = vmatprep.subr.mxu0 0.0
    %496 = vmatpush1.msra.mxu0 %v467
    %497 = vmatprep.subr.mxu0 0.0
    %498 = vmatpush1.msra.mxu0 %v432
    %499 = vmatprep.subr.mxu0 0.0
    %500 = vmatpush1.msra.mxu0 %v431
    %501 = vmatprep.subr.mxu0 0.0
    %502 = vmatpush2.msra.mxu0 0.0
    %503 = vmatprep.subr.mxu0 0.0
    %504 = vmatpush2.msra.mxu0 0.0
    %505 = vmatprep.subr.mxu0 0.0
    %506 = vmatpush2.msra.mxu0 0.0
    %507 = vmatprep.subr.mxu0 0.0
    %508 = vmatpush2.msra.mxu0 0.0
    %509 = vmatprep.subr.mxu0 0.0
    %510 = vmatpush2.msra.mxu0 0.0
    %511 = vmatprep.subr.mxu0 0.0
    %512 = vmatpush2.msra.mxu0 0.0
    %513 = vmatprep.subr.mxu0 0.0
    %514 = vmatpush2.msra.mxu0 0.0
    %515 = vmatprep.subr.mxu0 0.0
    %516 = vmatpush2.msra.mxu0 0.0
    %517 = vmatprep.subr.mxu0 0.0
    %518 = vmatpush2.msra.mxu0 0.0
    %519 = vmatprep.subr.mxu0 0.0
    %520 = vmatpush2.msra.mxu0 0.0
    %521 = vmatprep.subr.mxu0 0.0
    %522 = vmatpush2.msra.mxu0 0.0
    %523 = vmatprep.subr.mxu0 0.0
    %524 = vmatpush2.msra.mxu0 0.0
    %525 = vmatprep.subr.mxu0 0.0
    %526 = vmatpush2.msra.mxu0 0.0
    %527 = vmatprep.subr.mxu0 0.0
    %528 = vmatpush2.msra.mxu0 0.0
    %529 = vmatprep.subr.mxu0 0.0
    %530 = vmatpush2.msra.mxu0 0.0
    %531 = vmatprep.subr.mxu0 0.0
    %532 = vmatpush2.msra.mxu0 0.0
    %533 = vmatprep.mubr.f32.mxu0 0.0
    %534 = vmatmul.mubr.f32.gmra.mxu0 %v458
    %v535 = vpop.f32.mrf.mxu0
    %v536 = vadd.f32 %v445, %v535
    %v537 = vpop.f32.mrf.mxu0
    %538 = vmatprep.mubr.f32.mxu0 0.0
    %539 = vmatmul.mubr.f32.gmra.mxu0 %v461
    %v540 = vpop.f32.mrf.mxu0
    %v541 = vadd.f32 %v450, %v540
    %v542 = vpop.f32.mrf.mxu0
    %543 = vmatprep.mubr.f32.mxu0 0.0
    %544 = vmatmul.mubr.f32.gmra.mxu0 %v464
    %v545 = vpop.f32.mrf.mxu0
    %v546 = vadd.f32 %v455, %v545
    %v547 = vpop.f32.mrf.mxu0
    %548 = vdwg.mxu0
    %v549 = vmax.f32 %v536, 0.0
    %v550 = vmax.f32 %v541, 0.0
    %v551 = vmax.f32 %v546, 0.0
    %s552 = scalar_lea.vmem %s3, 96
    %v553 = vld [vmem:[%s552] sm:$0xff]
    %v554 = vld [vmem:[%s552 + $0x8] sm:$0xff]
    %v555 = vld [vmem:[%s552 + $0x10] sm:$0xf]
    %s556 = scalar_lea.vmem %s4, 96
    %v557 = vld [vmem:[%s556] sm:$0xff]
    %v558 = vld [vmem:[%s556 + $0x8] sm:$0xff]
    %v559 = vld [vmem:[%s556 + $0x10] sm:$0xf]
    %561 = vset.pattern.permute.xlu0 0
    %562 = vperm.xlu0 %561, %v557
    %v563 = vpop.permute.xlu0 %562
    %566 = vset.pattern.permute.xlu0 0
    %567 = vperm.xlu0 %566, %v558
    %v568 = vpop.permute.xlu0 %567
    %571 = vset.pattern.permute.xlu0 0
    %572 = vperm.xlu0 %571, %v559
    %v573 = vpop.permute.xlu0 %572
    %v576 = vsel %vm101, %v553, 0
    %v579 = vsel %vm101, %v554, 0
    %v582 = vsel %vm101, %v555, 0
    %v585 = vsel %vm111, %v551, 0
    %587 = vmatprep.subr.mxu0 0.0
    %588 = vmatpush1.msra.mxu0 0.0
    %589 = vmatprep.subr.mxu0 0.0
    %590 = vmatpush1.msra.mxu0 0.0
    %591 = vmatprep.subr.mxu0 0.0
    %592 = vmatpush1.msra.mxu0 0.0
    %593 = vmatprep.subr.mxu0 0.0
    %594 = vmatpush1.msra.mxu0 0.0
    %595 = vmatprep.subr.mxu0 0.0
    %596 = vmatpush1.msra.mxu0 0.0
    %597 = vmatprep.subr.mxu0 0.0
    %598 = vmatpush1.msra.mxu0 0.0
    %599 = vmatprep.subr.mxu0 0.0
    %600 = vmatpush1.msra.mxu0 0.0
    %601 = vmatprep.subr.mxu0 0.0
    %602 = vmatpush1.msra.mxu0 0.0
    %603 = vmatprep.subr.mxu0 0.0
    %604 = vmatpush1.msra.mxu0 0.0
    %605 = vmatprep.subr.mxu0 0.0
    %606 = vmatpush1.msra.mxu0 0.0
    %607 = vmatprep.subr.mxu0 0.0
    %608 = vmatpush1.msra.mxu0 0.0
    %609 = vmatprep.subr.mxu0 0.0
    %610 = vmatpush1.msra.mxu0 0.0
    %611 = vmatprep.subr.mxu0 0.0
    %612 = vmatpush1.msra.mxu0 0.0
    %613 = vmatprep.subr.mxu0 0.0
    %614 = vmatpush1.msra.mxu0 %v585
    %615 = vmatprep.subr.mxu0 0.0
    %616 = vmatpush1.msra.mxu0 %v550
    %617 = vmatprep.subr.mxu0 0.0
    %618 = vmatpush1.msra.mxu0 %v549
    %619 = vmatprep.subr.mxu0 0.0
    %620 = vmatpush2.msra.mxu0 0.0
    %621 = vmatprep.subr.mxu0 0.0
    %622 = vmatpush2.msra.mxu0 0.0
    %623 = vmatprep.subr.mxu0 0.0
    %624 = vmatpush2.msra.mxu0 0.0
    %625 = vmatprep.subr.mxu0 0.0
    %626 = vmatpush2.msra.mxu0 0.0
    %627 = vmatprep.subr.mxu0 0.0
    %628 = vmatpush2.msra.mxu0 0.0
    %629 = vmatprep.subr.mxu0 0.0
    %630 = vmatpush2.msra.mxu0 0.0
    %631 = vmatprep.subr.mxu0 0.0
    %632 = vmatpush2.msra.mxu0 0.0
    %633 = vmatprep.subr.mxu0 0.0
    %634 = vmatpush2.msra.mxu0 0.0
    %635 = vmatprep.subr.mxu0 0.0
    %636 = vmatpush2.msra.mxu0 0.0
    %637 = vmatprep.subr.mxu0 0.0
    %638 = vmatpush2.msra.mxu0 0.0
    %639 = vmatprep.subr.mxu0 0.0
    %640 = vmatpush2.msra.mxu0 0.0
    %641 = vmatprep.subr.mxu0 0.0
    %642 = vmatpush2.msra.mxu0 0.0
    %643 = vmatprep.subr.mxu0 0.0
    %644 = vmatpush2.msra.mxu0 0.0
    %645 = vmatprep.subr.mxu0 0.0
    %646 = vmatpush2.msra.mxu0 0.0
    %647 = vmatprep.subr.mxu0 0.0
    %648 = vmatpush2.msra.mxu0 0.0
    %649 = vmatprep.subr.mxu0 0.0
    %650 = vmatpush2.msra.mxu0 0.0
    %651 = vmatprep.mubr.f32.mxu0 0.0
    %652 = vmatmul.mubr.f32.gmra.mxu0 %v576
    %v653 = vpop.f32.mrf.mxu0
    %v654 = vadd.f32 %v563, %v653
    %v655 = vpop.f32.mrf.mxu0
    %656 = vmatprep.mubr.f32.mxu0 0.0
    %657 = vmatmul.mubr.f32.gmra.mxu0 %v579
    %v658 = vpop.f32.mrf.mxu0
    %v659 = vadd.f32 %v568, %v658
    %v660 = vpop.f32.mrf.mxu0
    %661 = vmatprep.mubr.f32.mxu0 0.0
    %662 = vmatmul.mubr.f32.gmra.mxu0 %v582
    %v663 = vpop.f32.mrf.mxu0
    %v664 = vadd.f32 %v573, %v663
    %v665 = vpop.f32.mrf.mxu0
    %666 = vdwg.mxu0
    %v667 = vmax.f32 %v654, 0.0
    %v668 = vmax.f32 %v659, 0.0
    %v669 = vmax.f32 %v664, 0.0
    %s670 = scalar_lea.vmem %s3, 120
    %v671 = vld [vmem:[%s670] sm:$0xff]
    %v672 = vld [vmem:[%s670 + $0x8] sm:$0xff]
    %v673 = vld [vmem:[%s670 + $0x10] sm:$0xf]
    %s674 = scalar_lea.vmem %s4, 120
    %v675 = vld [vmem:[%s674] sm:$0xff]
    %v676 = vld [vmem:[%s674 + $0x8] sm:$0xff]
    %v677 = vld [vmem:[%s674 + $0x10] sm:$0xf]
    %679 = vset.pattern.permute.xlu0 0
    %680 = vperm.xlu0 %679, %v675
    %v681 = vpop.permute.xlu0 %680
    %684 = vset.pattern.permute.xlu0 0
    %685 = vperm.xlu0 %684, %v676
    %v686 = vpop.permute.xlu0 %685
    %689 = vset.pattern.permute.xlu0 0
    %690 = vperm.xlu0 %689, %v677
    %v691 = vpop.permute.xlu0 %690
    %v694 = vsel %vm101, %v671, 0
    %v697 = vsel %vm101, %v672, 0
    %v700 = vsel %vm101, %v673, 0
    %v703 = vsel %vm111, %v669, 0
    %705 = vmatprep.subr.mxu0 0.0
    %706 = vmatpush1.msra.mxu0 0.0
    %707 = vmatprep.subr.mxu0 0.0
    %708 = vmatpush1.msra.mxu0 0.0
    %709 = vmatprep.subr.mxu0 0.0
    %710 = vmatpush1.msra.mxu0 0.0
    %711 = vmatprep.subr.mxu0 0.0
    %712 = vmatpush1.msra.mxu0 0.0
    %713 = vmatprep.subr.mxu0 0.0
    %714 = vmatpush1.msra.mxu0 0.0
    %715 = vmatprep.subr.mxu0 0.0
    %716 = vmatpush1.msra.mxu0 0.0
    %717 = vmatprep.subr.mxu0 0.0
    %718 = vmatpush1.msra.mxu0 0.0
    %719 = vmatprep.subr.mxu0 0.0
    %720 = vmatpush1.msra.mxu0 0.0
    %721 = vmatprep.subr.mxu0 0.0
    %722 = vmatpush1.msra.mxu0 0.0
    %723 = vmatprep.subr.mxu0 0.0
    %724 = vmatpush1.msra.mxu0 0.0
    %725 = vmatprep.subr.mxu0 0.0
    %726 = vmatpush1.msra.mxu0 0.0
    %727 = vmatprep.subr.mxu0 0.0
    %728 = vmatpush1.msra.mxu0 0.0
    %729 = vmatprep.subr.mxu0 0.0
    %730 = vmatpush1.msra.mxu0 0.0
    %731 = vmatprep.subr.mxu0 0.0
    %732 = vmatpush1.msra.mxu0 %v703
    %733 = vmatprep.subr.mxu0 0.0
    %734 = vmatpush1.msra.mxu0 %v668
    %735 = vmatprep.subr.mxu0 0.0
    %736 = vmatpush1.msra.mxu0 %v667
    %737 = vmatprep.subr.mxu0 0.0
    %738 = vmatpush2.msra.mxu0 0.0
    %739 = vmatprep.subr.mxu0 0.0
    %740 = vmatpush2.msra.mxu0 0.0
    %741 = vmatprep.subr.mxu0 0.0
    %742 = vmatpush2.msra.mxu0 0.0
    %743 = vmatprep.subr.mxu0 0.0
    %744 = vmatpush2.msra.mxu0 0.0
    %745 = vmatprep.subr.mxu0 0.0
    %746 = vmatpush2.msra.mxu0 0.0
    %747 = vmatprep.subr.mxu0 0.0
    %748 = vmatpush2.msra.mxu0 0.0
    %749 = vmatprep.subr.mxu0 0.0
    %750 = vmatpush2.msra.mxu0 0.0
    %751 = vmatprep.subr.mxu0 0.0
    %752 = vmatpush2.msra.mxu0 0.0
    %753 = vmatprep.subr.mxu0 0.0
    %754 = vmatpush2.msra.mxu0 0.0
    %755 = vmatprep.subr.mxu0 0.0
    %756 = vmatpush2.msra.mxu0 0.0
    %757 = vmatprep.subr.mxu0 0.0
    %758 = vmatpush2.msra.mxu0 0.0
    %759 = vmatprep.subr.mxu0 0.0
    %760 = vmatpush2.msra.mxu0 0.0
    %761 = vmatprep.subr.mxu0 0.0
    %762 = vmatpush2.msra.mxu0 0.0
    %763 = vmatprep.subr.mxu0 0.0
    %764 = vmatpush2.msra.mxu0 0.0
    %765 = vmatprep.subr.mxu0 0.0
    %766 = vmatpush2.msra.mxu0 0.0
    %767 = vmatprep.subr.mxu0 0.0
    %768 = vmatpush2.msra.mxu0 0.0
    %769 = vmatprep.mubr.f32.mxu0 0.0
    %770 = vmatmul.mubr.f32.gmra.mxu0 %v694
    %v771 = vpop.f32.mrf.mxu0
    %v772 = vadd.f32 %v681, %v771
    %v773 = vpop.f32.mrf.mxu0
    %774 = vmatprep.mubr.f32.mxu0 0.0
    %775 = vmatmul.mubr.f32.gmra.mxu0 %v697
    %v776 = vpop.f32.mrf.mxu0
    %v777 = vadd.f32 %v686, %v776
    %v778 = vpop.f32.mrf.mxu0
    %779 = vmatprep.mubr.f32.mxu0 0.0
    %780 = vmatmul.mubr.f32.gmra.mxu0 %v700
    %v781 = vpop.f32.mrf.mxu0
    %v782 = vadd.f32 %v691, %v781
    %v783 = vpop.f32.mrf.mxu0
    %784 = vdwg.mxu0
    %v785 = vmax.f32 %v772, 0.0
    %v786 = vmax.f32 %v777, 0.0
    %v787 = vmax.f32 %v782, 0.0
    %s788 = scalar_lea.vmem %s3, 144
    %v789 = vld [vmem:[%s788] sm:$0xff]
    %v790 = vld [vmem:[%s788 + $0x8] sm:$0xff]
    %v791 = vld [vmem:[%s788 + $0x10] sm:$0xf]
    %s792 = scalar_lea.vmem %s4, 144
    %v793 = vld [vmem:[%s792] sm:$0xff]
    %v794 = vld [vmem:[%s792 + $0x8] sm:$0xff]
    %v795 = vld [vmem:[%s792 + $0x10] sm:$0xf]
    %797 = vset.pattern.permute.xlu0 0
    %798 = vperm.xlu0 %797, %v793
    %v799 = vpop.permute.xlu0 %798
    %802 = vset.pattern.permute.xlu0 0
    %803 = vperm.xlu0 %802, %v794
    %v804 = vpop.permute.xlu0 %803
    %807 = vset.pattern.permute.xlu0 0
    %808 = vperm.xlu0 %807, %v795
    %v809 = vpop.permute.xlu0 %808
    %v812 = vsel %vm101, %v789, 0
    %v815 = vsel %vm101, %v790, 0
    %v818 = vsel %vm101, %v791, 0
    %v821 = vsel %vm111, %v787, 0
    %823 = vmatprep.subr.mxu0 0.0
    %824 = vmatpush1.msra.mxu0 0.0
    %825 = vmatprep.subr.mxu0 0.0
    %826 = vmatpush1.msra.mxu0 0.0
    %827 = vmatprep.subr.mxu0 0.0
    %828 = vmatpush1.msra.mxu0 0.0
    %829 = vmatprep.subr.mxu0 0.0
    %830 = vmatpush1.msra.mxu0 0.0
    %831 = vmatprep.subr.mxu0 0.0
    %832 = vmatpush1.msra.mxu0 0.0
    %833 = vmatprep.subr.mxu0 0.0
    %834 = vmatpush1.msra.mxu0 0.0
    %835 = vmatprep.subr.mxu0 0.0
    %836 = vmatpush1.msra.mxu0 0.0
    %837 = vmatprep.subr.mxu0 0.0
    %838 = vmatpush1.msra.mxu0 0.0
    %839 = vmatprep.subr.mxu0 0.0
    %840 = vmatpush1.msra.mxu0 0.0
    %841 = vmatprep.subr.mxu0 0.0
    %842 = vmatpush1.msra.mxu0 0.0
    %843 = vmatprep.subr.mxu0 0.0
    %844 = vmatpush1.msra.mxu0 0.0
    %845 = vmatprep.subr.mxu0 0.0
    %846 = vmatpush1.msra.mxu0 0.0
    %847 = vmatprep.subr.mxu0 0.0
    %848 = vmatpush1.msra.mxu0 0.0
    %849 = vmatprep.subr.mxu0 0.0
    %850 = vmatpush1.msra.mxu0 %v821
    %851 = vmatprep.subr.mxu0 0.0
    %852 = vmatpush1.msra.mxu0 %v786
    %853 = vmatprep.subr.mxu0 0.0
    %854 = vmatpush1.msra.mxu0 %v785
    %855 = vmatprep.subr.mxu0 0.0
    %856 = vmatpush2.msra.mxu0 0.0
    %857 = vmatprep.subr.mxu0 0.0
    %858 = vmatpush2.msra.mxu0 0.0
    %859 = vmatprep.subr.mxu0 0.0
    %860 = vmatpush2.msra.mxu0 0.0
    %861 = vmatprep.subr.mxu0 0.0
    %862 = vmatpush2.msra.mxu0 0.0
    %863 = vmatprep.subr.mxu0 0.0
    %864 = vmatpush2.msra.mxu0 0.0
    %865 = vmatprep.subr.mxu0 0.0
    %866 = vmatpush2.msra.mxu0 0.0
    %867 = vmatprep.subr.mxu0 0.0
    %868 = vmatpush2.msra.mxu0 0.0
    %869 = vmatprep.subr.mxu0 0.0
    %870 = vmatpush2.msra.mxu0 0.0
    %871 = vmatprep.subr.mxu0 0.0
    %872 = vmatpush2.msra.mxu0 0.0
    %873 = vmatprep.subr.mxu0 0.0
    %874 = vmatpush2.msra.mxu0 0.0
    %875 = vmatprep.subr.mxu0 0.0
    %876 = vmatpush2.msra.mxu0 0.0
    %877 = vmatprep.subr.mxu0 0.0
    %878 = vmatpush2.msra.mxu0 0.0
    %879 = vmatprep.subr.mxu0 0.0
    %880 = vmatpush2.msra.mxu0 0.0
    %881 = vmatprep.subr.mxu0 0.0
    %882 = vmatpush2.msra.mxu0 0.0
    %883 = vmatprep.subr.mxu0 0.0
    %884 = vmatpush2.msra.mxu0 0.0
    %885 = vmatprep.subr.mxu0 0.0
    %886 = vmatpush2.msra.mxu0 0.0
    %887 = vmatprep.mubr.f32.mxu0 0.0
    %888 = vmatmul.mubr.f32.gmra.mxu0 %v812
    %v889 = vpop.f32.mrf.mxu0
    %v890 = vadd.f32 %v799, %v889
    %v891 = vpop.f32.mrf.mxu0
    %892 = vmatprep.mubr.f32.mxu0 0.0
    %893 = vmatmul.mubr.f32.gmra.mxu0 %v815
    %v894 = vpop.f32.mrf.mxu0
    %v895 = vadd.f32 %v804, %v894
    %v896 = vpop.f32.mrf.mxu0
    %897 = vmatprep.mubr.f32.mxu0 0.0
    %898 = vmatmul.mubr.f32.gmra.mxu0 %v818
    %v899 = vpop.f32.mrf.mxu0
    %v900 = vadd.f32 %v809, %v899
    %v901 = vpop.f32.mrf.mxu0
    %902 = vdwg.mxu0
    %v903 = vmax.f32 %v890, 0.0
    %v904 = vmax.f32 %v895, 0.0
    %v905 = vmax.f32 %v900, 0.0
    %s906 = scalar_lea.vmem %s3, 168
    %v907 = vld [vmem:[%s906] sm:$0xff]
    %v908 = vld [vmem:[%s906 + $0x8] sm:$0xff]
    %v909 = vld [vmem:[%s906 + $0x10] sm:$0xf]
    %s910 = scalar_lea.vmem %s4, 168
    %v911 = vld [vmem:[%s910] sm:$0xff]
    %v912 = vld [vmem:[%s910 + $0x8] sm:$0xff]
    %v913 = vld [vmem:[%s910 + $0x10] sm:$0xf]
    %915 = vset.pattern.permute.xlu0 0
    %916 = vperm.xlu0 %915, %v911
    %v917 = vpop.permute.xlu0 %916
    %920 = vset.pattern.permute.xlu0 0
    %921 = vperm.xlu0 %920, %v912
    %v922 = vpop.permute.xlu0 %921
    %925 = vset.pattern.permute.xlu0 0
    %926 = vperm.xlu0 %925, %v913
    %v927 = vpop.permute.xlu0 %926
    %v930 = vsel %vm101, %v907, 0
    %v933 = vsel %vm101, %v908, 0
    %v936 = vsel %vm101, %v909, 0
    %v939 = vsel %vm111, %v905, 0
    %941 = vmatprep.subr.mxu0 0.0
    %942 = vmatpush1.msra.mxu0 0.0
    %943 = vmatprep.subr.mxu0 0.0
    %944 = vmatpush1.msra.mxu0 0.0
    %945 = vmatprep.subr.mxu0 0.0
    %946 = vmatpush1.msra.mxu0 0.0
    %947 = vmatprep.subr.mxu0 0.0
    %948 = vmatpush1.msra.mxu0 0.0
    %949 = vmatprep.subr.mxu0 0.0
    %950 = vmatpush1.msra.mxu0 0.0
    %951 = vmatprep.subr.mxu0 0.0
    %952 = vmatpush1.msra.mxu0 0.0
    %953 = vmatprep.subr.mxu0 0.0
    %954 = vmatpush1.msra.mxu0 0.0
    %955 = vmatprep.subr.mxu0 0.0
    %956 = vmatpush1.msra.mxu0 0.0
    %957 = vmatprep.subr.mxu0 0.0
    %958 = vmatpush1.msra.mxu0 0.0
    %959 = vmatprep.subr.mxu0 0.0
    %960 = vmatpush1.msra.mxu0 0.0
    %961 = vmatprep.subr.mxu0 0.0
    %962 = vmatpush1.msra.mxu0 0.0
    %963 = vmatprep.subr.mxu0 0.0
    %964 = vmatpush1.msra.mxu0 0.0
    %965 = vmatprep.subr.mxu0 0.0
    %966 = vmatpush1.msra.mxu0 0.0
    %967 = vmatprep.subr.mxu0 0.0
    %968 = vmatpush1.msra.mxu0 %v939
    %969 = vmatprep.subr.mxu0 0.0
    %970 = vmatpush1.msra.mxu0 %v904
    %971 = vmatprep.subr.mxu0 0.0
    %972 = vmatpush1.msra.mxu0 %v903
    %973 = vmatprep.subr.mxu0 0.0
    %974 = vmatpush2.msra.mxu0 0.0
    %975 = vmatprep.subr.mxu0 0.0
    %976 = vmatpush2.msra.mxu0 0.0
    %977 = vmatprep.subr.mxu0 0.0
    %978 = vmatpush2.msra.mxu0 0.0
    %979 = vmatprep.subr.mxu0 0.0
    %980 = vmatpush2.msra.mxu0 0.0
    %981 = vmatprep.subr.mxu0 0.0
    %982 = vmatpush2.msra.mxu0 0.0
    %983 = vmatprep.subr.mxu0 0.0
    %984 = vmatpush2.msra.mxu0 0.0
    %985 = vmatprep.subr.mxu0 0.0
    %986 = vmatpush2.msra.mxu0 0.0
    %987 = vmatprep.subr.mxu0 0.0
    %988 = vmatpush2.msra.mxu0 0.0
    %989 = vmatprep.subr.mxu0 0.0
    %990 = vmatpush2.msra.mxu0 0.0
    %991 = vmatprep.subr.mxu0 0.0
    %992 = vmatpush2.msra.mxu0 0.0
    %993 = vmatprep.subr.mxu0 0.0
    %994 = vmatpush2.msra.mxu0 0.0
    %995 = vmatprep.subr.mxu0 0.0
    %996 = vmatpush2.msra.mxu0 0.0
    %997 = vmatprep.subr.mxu0 0.0
    %998 = vmatpush2.msra.mxu0 0.0
    %999 = vmatprep.subr.mxu0 0.0
    %1000 = vmatpush2.msra.mxu0 0.0
    %1001 = vmatprep.subr.mxu0 0.0
    %1002 = vmatpush2.msra.mxu0 0.0
    %1003 = vmatprep.subr.mxu0 0.0
    %1004 = vmatpush2.msra.mxu0 0.0
    %1005 = vmatprep.mubr.f32.mxu0 0.0
    %1006 = vmatmul.mubr.f32.gmra.mxu0 %v930
    %v1007 = vpop.f32.mrf.mxu0
    %v1008 = vadd.f32 %v917, %v1007
    %v1009 = vpop.f32.mrf.mxu0
    %1010 = vmatprep.mubr.f32.mxu0 0.0
    %1011 = vmatmul.mubr.f32.gmra.mxu0 %v933
    %v1012 = vpop.f32.mrf.mxu0
    %v1013 = vadd.f32 %v922, %v1012
    %v1014 = vpop.f32.mrf.mxu0
    %1015 = vmatprep.mubr.f32.mxu0 0.0
    %1016 = vmatmul.mubr.f32.gmra.mxu0 %v936
    %v1017 = vpop.f32.mrf.mxu0
    %v1018 = vadd.f32 %v927, %v1017
    %v1019 = vpop.f32.mrf.mxu0
    %1020 = vdwg.mxu0
    %v1021 = vmax.f32 %v1008, 0.0
    %v1022 = vmax.f32 %v1013, 0.0
    %v1023 = vmax.f32 %v1018, 0.0
    %s1024 = scalar_lea.vmem %s3, 192
    %v1025 = vld [vmem:[%s1024] sm:$0xff]
    %v1026 = vld [vmem:[%s1024 + $0x8] sm:$0xff]
    %v1027 = vld [vmem:[%s1024 + $0x10] sm:$0xf]
    %s1028 = scalar_lea.vmem %s4, 192
    %v1029 = vld [vmem:[%s1028] sm:$0xff]
    %v1030 = vld [vmem:[%s1028 + $0x8] sm:$0xff]
    %v1031 = vld [vmem:[%s1028 + $0x10] sm:$0xf]
    %1033 = vset.pattern.permute.xlu0 0
    %1034 = vperm.xlu0 %1033, %v1029
    %v1035 = vpop.permute.xlu0 %1034
    %1038 = vset.pattern.permute.xlu0 0
    %1039 = vperm.xlu0 %1038, %v1030
    %v1040 = vpop.permute.xlu0 %1039
    %1043 = vset.pattern.permute.xlu0 0
    %1044 = vperm.xlu0 %1043, %v1031
    %v1045 = vpop.permute.xlu0 %1044
    %v1048 = vsel %vm101, %v1025, 0
    %v1051 = vsel %vm101, %v1026, 0
    %v1054 = vsel %vm101, %v1027, 0
    %v1057 = vsel %vm111, %v1023, 0
    %1059 = vmatprep.subr.mxu0 0.0
    %1060 = vmatpush1.msra.mxu0 0.0
    %1061 = vmatprep.subr.mxu0 0.0
    %1062 = vmatpush1.msra.mxu0 0.0
    %1063 = vmatprep.subr.mxu0 0.0
    %1064 = vmatpush1.msra.mxu0 0.0
    %1065 = vmatprep.subr.mxu0 0.0
    %1066 = vmatpush1.msra.mxu0 0.0
    %1067 = vmatprep.subr.mxu0 0.0
    %1068 = vmatpush1.msra.mxu0 0.0
    %1069 = vmatprep.subr.mxu0 0.0
    %1070 = vmatpush1.msra.mxu0 0.0
    %1071 = vmatprep.subr.mxu0 0.0
    %1072 = vmatpush1.msra.mxu0 0.0
    %1073 = vmatprep.subr.mxu0 0.0
    %1074 = vmatpush1.msra.mxu0 0.0
    %1075 = vmatprep.subr.mxu0 0.0
    %1076 = vmatpush1.msra.mxu0 0.0
    %1077 = vmatprep.subr.mxu0 0.0
    %1078 = vmatpush1.msra.mxu0 0.0
    %1079 = vmatprep.subr.mxu0 0.0
    %1080 = vmatpush1.msra.mxu0 0.0
    %1081 = vmatprep.subr.mxu0 0.0
    %1082 = vmatpush1.msra.mxu0 0.0
    %1083 = vmatprep.subr.mxu0 0.0
    %1084 = vmatpush1.msra.mxu0 0.0
    %1085 = vmatprep.subr.mxu0 0.0
    %1086 = vmatpush1.msra.mxu0 %v1057
    %1087 = vmatprep.subr.mxu0 0.0
    %1088 = vmatpush1.msra.mxu0 %v1022
    %1089 = vmatprep.subr.mxu0 0.0
    %1090 = vmatpush1.msra.mxu0 %v1021
    %1091 = vmatprep.subr.mxu0 0.0
    %1092 = vmatpush2.msra.mxu0 0.0
    %1093 = vmatprep.subr.mxu0 0.0
    %1094 = vmatpush2.msra.mxu0 0.0
    %1095 = vmatprep.subr.mxu0 0.0
    %1096 = vmatpush2.msra.mxu0 0.0
    %1097 = vmatprep.subr.mxu0 0.0
    %1098 = vmatpush2.msra.mxu0 0.0
    %1099 = vmatprep.subr.mxu0 0.0
    %1100 = vmatpush2.msra.mxu0 0.0
    %1101 = vmatprep.subr.mxu0 0.0
    %1102 = vmatpush2.msra.mxu0 0.0
    %1103 = vmatprep.subr.mxu0 0.0
    %1104 = vmatpush2.msra.mxu0 0.0
    %1105 = vmatprep.subr.mxu0 0.0
    %1106 = vmatpush2.msra.mxu0 0.0
    %1107 = vmatprep.subr.mxu0 0.0
    %1108 = vmatpush2.msra.mxu0 0.0
    %1109 = vmatprep.subr.mxu0 0.0
    %1110 = vmatpush2.msra.mxu0 0.0
    %1111 = vmatprep.subr.mxu0 0.0
    %1112 = vmatpush2.msra.mxu0 0.0
    %1113 = vmatprep.subr.mxu0 0.0
    %1114 = vmatpush2.msra.mxu0 0.0
    %1115 = vmatprep.subr.mxu0 0.0
    %1116 = vmatpush2.msra.mxu0 0.0
    %1117 = vmatprep.subr.mxu0 0.0
    %1118 = vmatpush2.msra.mxu0 0.0
    %1119 = vmatprep.subr.mxu0 0.0
    %1120 = vmatpush2.msra.mxu0 0.0
    %1121 = vmatprep.subr.mxu0 0.0
    %1122 = vmatpush2.msra.mxu0 0.0
    %1123 = vmatprep.mubr.f32.mxu0 0.0
    %1124 = vmatmul.mubr.f32.gmra.mxu0 %v1048
    %v1125 = vpop.f32.mrf.mxu0
    %v1126 = vadd.f32 %v1035, %v1125
    %v1127 = vpop.f32.mrf.mxu0
    %1128 = vmatprep.mubr.f32.mxu0 0.0
    %1129 = vmatmul.mubr.f32.gmra.mxu0 %v1051
    %v1130 = vpop.f32.mrf.mxu0
    %v1131 = vadd.f32 %v1040, %v1130
    %v1132 = vpop.f32.mrf.mxu0
    %1133 = vmatprep.mubr.f32.mxu0 0.0
    %1134 = vmatmul.mubr.f32.gmra.mxu0 %v1054
    %v1135 = vpop.f32.mrf.mxu0
    %v1136 = vadd.f32 %v1045, %v1135
    %v1137 = vpop.f32.mrf.mxu0
    %1138 = vdwg.mxu0
    %v1139 = vmax.f32 %v1126, 0.0
    %v1140 = vmax.f32 %v1131, 0.0
    %v1141 = vmax.f32 %v1136, 0.0
    %v1142 = vld [vmem:[%s5] sm:$0x1]
    %s1143 = sld [smem:[#allocation2]]
    %v1144 = vstv %s1143
    %v1146 = vsel %vm101, %v1142, 0
    %v1149 = vsel %vm111, %v1141, 0
    %1151 = vmatprep.subr.mxu0 0.0
    %1152 = vmatpush1.msra.mxu0 0.0
    %1153 = vmatprep.subr.mxu0 0.0
    %1154 = vmatpush1.msra.mxu0 0.0
    %1155 = vmatprep.subr.mxu0 0.0
    %1156 = vmatpush1.msra.mxu0 0.0
    %1157 = vmatprep.subr.mxu0 0.0
    %1158 = vmatpush1.msra.mxu0 0.0
    %1159 = vmatprep.subr.mxu0 0.0
    %1160 = vmatpush1.msra.mxu0 0.0
    %1161 = vmatprep.subr.mxu0 0.0
    %1162 = vmatpush1.msra.mxu0 0.0
    %1163 = vmatprep.subr.mxu0 0.0
    %1164 = vmatpush1.msra.mxu0 0.0
    %1165 = vmatprep.subr.mxu0 0.0
    %1166 = vmatpush1.msra.mxu0 0.0
    %1167 = vmatprep.subr.mxu0 0.0
    %1168 = vmatpush1.msra.mxu0 0.0
    %1169 = vmatprep.subr.mxu0 0.0
    %1170 = vmatpush1.msra.mxu0 0.0
    %1171 = vmatprep.subr.mxu0 0.0
    %1172 = vmatpush1.msra.mxu0 0.0
    %1173 = vmatprep.subr.mxu0 0.0
    %1174 = vmatpush1.msra.mxu0 0.0
    %1175 = vmatprep.subr.mxu0 0.0
    %1176 = vmatpush1.msra.mxu0 0.0
    %1177 = vmatprep.subr.mxu0 0.0
    %1178 = vmatpush1.msra.mxu0 %v1149
    %1179 = vmatprep.subr.mxu0 0.0
    %1180 = vmatpush1.msra.mxu0 %v1140
    %1181 = vmatprep.subr.mxu0 0.0
    %1182 = vmatpush1.msra.mxu0 %v1139
    %1183 = vmatprep.subr.mxu0 0.0
    %1184 = vmatpush2.msra.mxu0 0.0
    %1185 = vmatprep.subr.mxu0 0.0
    %1186 = vmatpush2.msra.mxu0 0.0
    %1187 = vmatprep.subr.mxu0 0.0
    %1188 = vmatpush2.msra.mxu0 0.0
    %1189 = vmatprep.subr.mxu0 0.0
    %1190 = vmatpush2.msra.mxu0 0.0
    %1191 = vmatprep.subr.mxu0 0.0
    %1192 = vmatpush2.msra.mxu0 0.0
    %1193 = vmatprep.subr.mxu0 0.0
    %1194 = vmatpush2.msra.mxu0 0.0
    %1195 = vmatprep.subr.mxu0 0.0
    %1196 = vmatpush2.msra.mxu0 0.0
    %1197 = vmatprep.subr.mxu0 0.0
    %1198 = vmatpush2.msra.mxu0 0.0
    %1199 = vmatprep.subr.mxu0 0.0
    %1200 = vmatpush2.msra.mxu0 0.0
    %1201 = vmatprep.subr.mxu0 0.0
    %1202 = vmatpush2.msra.mxu0 0.0
    %1203 = vmatprep.subr.mxu0 0.0
    %1204 = vmatpush2.msra.mxu0 0.0
    %1205 = vmatprep.subr.mxu0 0.0
    %1206 = vmatpush2.msra.mxu0 0.0
    %1207 = vmatprep.subr.mxu0 0.0
    %1208 = vmatpush2.msra.mxu0 0.0
    %1209 = vmatprep.subr.mxu0 0.0
    %1210 = vmatpush2.msra.mxu0 0.0
    %1211 = vmatprep.subr.mxu0 0.0
    %1212 = vmatpush2.msra.mxu0 0.0
    %1213 = vmatprep.subr.mxu0 0.0
    %1214 = vmatpush2.msra.mxu0 0.0
    %1215 = vmatprep.mubr.f32.mxu0 0.0
    %1216 = vmatmul.mubr.f32.gmra.mxu0 %v1146
    %v1217 = vpop.f32.mrf.mxu0
    %v1218 = vadd.f32 %v1144, %v1217
    %v1219 = vpop.f32.mrf.mxu0
    %1220 = vdwg.mxu0
    %1221 = vst [vmem:[#allocation3] sm:$0x1] %v1218
    // Predicated region
    $region30: #{tpu_custom_call.1} parent=1 // pred_check
      _
    $region31: #{tpu_custom_call.1} parent=1 // pred_check_branch
      %1223 = sbr.rel (0) target = $region33
    $region32: #{tpu_custom_call.1} parent=1 // pred_region
      %s1225 = ssub.s32 16, 16
      %1226 = vsyncadd [#allocation4], %s1225
      %s1228 = sshll.u32 [#allocation3], 4
      %s1229 = int_to_ptr.vmem [resolvable:$true] %s1228
      %1231 = dma.vmem_to_hbm [thread:$0]  %s1229, 16, %s7, [#allocation4]
    $region33: #{tpu_custom_call.1} parent=1 // pred_fallthru
      _
    // Predicated region
    $region34: #{tpu_custom_call.1} parent=1 // pred_check
      _
    $region35: #{tpu_custom_call.1} parent=1 // pred_check_branch
      %1233 = sbr.rel (0) target = $region37
    $region36: #{tpu_custom_call.1} parent=1 // pred_region
      %1234 = dma.done [#allocation4], 16
    $region37: #{tpu_custom_call.1} parent=1 // pred_fallthru
      _
    %1235 = vsyncpa [#allocation4], 1

</llo_original>
